<compile_context>
chip_gen: v7x
topology: tpu7x:2x2x1
jax: 0.10.0
libtpu: 0.0.40
codegen_flags: <defaults>
</compile_context>

<pallas_src>
import functools

import jax
import jax.numpy as jnp
from jax.experimental import pallas as pl
from jax.experimental.pallas import tpu as pltpu


def _round_up(n, m):
    return ((n + m - 1) // m) * m


def ffn_ln_kernel(x_ref, w1_ref, b1_ref, w2_ref, b2_ref, g_ref, beta_ref, o_ref,
                  *, inv_d):
    # x stays in its native dtype for the MXU (bf16 path on v6e/v7x); all
    # accumulation / LN math is f32.
    x = x_ref[...]                                            # (tm, dm_p)

    # conv1 (kernel_size=1) == x @ W1^T + b1, then ReLU.
    h = jnp.dot(x, w1_ref[...], preferred_element_type=jnp.float32)
    h = jnp.maximum(h + b1_ref[...], 0.0)                     # (tm, di_p), f32

    # conv2 (kernel_size=1) == h @ W2^T + b2, then residual add (f32).
    y = jnp.dot(h.astype(x.dtype), w2_ref[...],
                preferred_element_type=jnp.float32)
    y = y + b2_ref[...] + x.astype(jnp.float32)               # (tm, dm_p)

    # LayerNorm over the real d_model lanes (eps = 1e-5, PyTorch default).
    # Padded lanes of y are exactly 0, so plain sums over the padded width are
    # the true sums; divide by the real width via the static inv_d.
    mean = jnp.sum(y, axis=-1, keepdims=True) * inv_d
    var = jnp.sum(y * y, axis=-1, keepdims=True) * inv_d - mean * mean
    var = jnp.maximum(var, 0.0)
    y_norm = (y - mean) * jax.lax.rsqrt(var + 1e-5)
    # gamma/beta are zero in padded lanes -> padded output lanes are 0.
    o_ref[...] = (y_norm * g_ref[...] + beta_ref[...]).astype(o_ref.dtype)


def poswise_ffn(x, w1, b1, w2, b2, gamma, beta, *, tile_rows=256):
    """x: (B, S, d_model); w1: (d_inner, d_model); w2: (d_model, d_inner)."""
    B, S, d_model = x.shape
    d_inner = w1.shape[0]
    N = B * S
    LANE = 128

    # Pad feature dims to lane width so loads/stores are lane-dense.
    dm_p = _round_up(d_model, LANE)
    di_p = _round_up(d_inner, LANE)

    # Row tile: big (default 256) to fill the MXU; clamp for tiny inputs.
    tm = max(8, min(int(tile_rows), _round_up(N, 8)))
    tm = _round_up(tm, 8)
    Np = _round_up(N, tm)          # pad rows so every tile is full (zeros -> finite LN)

    dtype = x.dtype
    itemsize = jnp.dtype(dtype).itemsize

    x2d = jnp.pad(x.reshape(N, d_model), ((0, Np - N), (0, dm_p - d_model)))

    # Pre-transpose weights so the kernel does row-major matmuls; keep them in
    # the activation dtype (bf16 weights on v6e/v7x when x is bf16).
    w1t = jnp.pad(w1.T, ((0, dm_p - d_model), (0, di_p - d_inner))).astype(dtype)
    w2t = jnp.pad(w2.T, ((0, di_p - d_inner), (0, dm_p - d_model))).astype(dtype)
    b1r = jnp.pad(b1, (0, di_p - d_inner)).reshape(1, di_p).astype(jnp.float32)
    b2r = jnp.pad(b2, (0, dm_p - d_model)).reshape(1, dm_p).astype(jnp.float32)
    g_r = jnp.pad(gamma, (0, dm_p - d_model)).reshape(1, dm_p).astype(jnp.float32)
    be_r = jnp.pad(beta, (0, dm_p - d_model)).reshape(1, dm_p).astype(jnp.float32)

    grid = (pl.cdiv(Np, tm),)

    # VMEM budget: double-buffered weights + double-buffered x/out tiles +
    # f32 hidden intermediate; clamp to a v7x-safe 64 MiB ceiling.
    # TODO(synk): for f32 weights at d_model>=1024/d_inner>=4096 add a K grid
    # axis ("arbitrary") over d_inner so W1/W2 are tiled instead of resident.
    bytes_w = 2 * (dm_p * di_p + di_p * dm_p) * itemsize
    bytes_act = 2 * 2 * tm * dm_p * itemsize
    bytes_h = 2 * tm * di_p * 4
    vmem_limit = int(min(64 * 1024 * 1024,
                         max(32 * 1024 * 1024, 2 * (bytes_w + bytes_act + bytes_h))))

    cost = pl.CostEstimate(
        flops=4 * N * d_model * d_inner + 8 * N * d_model,
        transcendentals=N,
        bytes_accessed=(2 * N * d_model + 2 * d_model * d_inner) * itemsize,
    )

    kernel = functools.partial(ffn_ln_kernel, inv_d=1.0 / float(d_model))

    out2d = pl.pallas_call(
        kernel,
        out_shape=jax.ShapeDtypeStruct((Np, dm_p), dtype),
        grid_spec=pltpu.PrefetchScalarGridSpec(
            num_scalar_prefetch=0,
            grid=grid,
            in_specs=[
                pl.BlockSpec((tm, dm_p), lambda i: (i, 0)),     # x rows
                pl.BlockSpec((dm_p, di_p), lambda i: (0, 0)),   # W1^T
                pl.BlockSpec((1, di_p), lambda i: (0, 0)),      # b1
                pl.BlockSpec((di_p, dm_p), lambda i: (0, 0)),   # W2^T
                pl.BlockSpec((1, dm_p), lambda i: (0, 0)),      # b2
                pl.BlockSpec((1, dm_p), lambda i: (0, 0)),      # gamma
                pl.BlockSpec((1, dm_p), lambda i: (0, 0)),      # beta
            ],
            out_specs=pl.BlockSpec((tm, dm_p), lambda i: (i, 0)),
        ),
        compiler_params=pltpu.CompilerParams(
            dimension_semantics=("parallel",),
            vmem_limit_bytes=vmem_limit,
        ),
        cost_estimate=cost,
    )(x2d, w1t, b1r, w2t, b2r, g_r, be_r)

    return out2d[:N, :d_model].reshape(B, S, d_model)


def reference(x, w1, b1, w2, b2, gamma, beta):
    """Pure-JAX reference mirroring the PyTorch module."""
    h = jnp.maximum(jnp.einsum("bsd,id->bsi", x, w1) + b1, 0.0)
    y = jnp.einsum("bsi,di->bsd", h, w2) + b2 + x
    mean = jnp.mean(y, axis=-1, keepdims=True)
    var = jnp.mean((y - mean) ** 2, axis=-1, keepdims=True)
    return (y - mean) * jax.lax.rsqrt(var + 1e-5) * gamma + beta


if __name__ == "__main__":
    B, S, d_model, d_inner = 2, 8, 32, 64

    key = jax.random.PRNGKey(0)
    kx, k1, kb1, k2, kb2 = jax.random.split(key, 5)

    x = jax.random.normal(kx, (B, S, d_model), dtype=jnp.float32)

    # Conv1d kernel_size=1 weights squeezed to 2-D: (out_channels, in_channels).
    w1 = jax.random.normal(k1, (d_inner, d_model), dtype=jnp.float32) * 0.1
    b1 = jax.random.normal(kb1, (d_inner,), dtype=jnp.float32) * 0.1
    w2 = jax.random.normal(k2, (d_model, d_inner), dtype=jnp.float32) * 0.1
    b2 = jax.random.normal(kb2, (d_model,), dtype=jnp.float32) * 0.1
    gamma = jnp.ones((d_model,), dtype=jnp.float32)
    beta = jnp.zeros((d_model,), dtype=jnp.float32)

    out = poswise_ffn(x, w1, b1, w2, b2, gamma, beta)
    jax.block_until_ready(out)

    ref = reference(x, w1, b1, w2, b2, gamma, beta)
    assert out.shape == (B, S, d_model)
    assert jnp.allclose(out, ref, atol=1e-4, rtol=1e-4), "mismatch vs reference"

    print("KERNEL_OK")
</pallas_src>

<mosaic_0001>
module attributes {stable_mosaic.version = 11 : i64} {
  func.func @ffn_ln_kernel(%arg0: i32, %arg1: memref<16x128xf32, #tpu.memory_space<vmem>>, %arg2: memref<128x128xf32, #tpu.memory_space<vmem>>, %arg3: memref<1x128xf32, #tpu.memory_space<vmem>>, %arg4: memref<128x128xf32, #tpu.memory_space<vmem>>, %arg5: memref<1x128xf32, #tpu.memory_space<vmem>>, %arg6: memref<1x128xf32, #tpu.memory_space<vmem>>, %arg7: memref<1x128xf32, #tpu.memory_space<vmem>>, %arg8: memref<16x128xf32, #tpu.memory_space<vmem>>) attributes {dimension_semantics = [#tpu.dimension_semantics<parallel>], iteration_bounds = array<i64: 1>, scalar_prefetch = 0 : i64, scratch_operands = 0 : i64, tpu.core_type = #tpu.core_type<tc>, window_params = [{transform_indices = @transform_0, window_bounds = array<i64: 16, 128>}, {pipeline_mode = #tpu.pipeline_mode<synchronous>, transform_indices = @transform_1, window_bounds = array<i64: 128, 128>}, {pipeline_mode = #tpu.pipeline_mode<synchronous>, transform_indices = @transform_2, window_bounds = array<i64: 1, 128>}, {pipeline_mode = #tpu.pipeline_mode<synchronous>, transform_indices = @transform_3, window_bounds = array<i64: 128, 128>}, {pipeline_mode = #tpu.pipeline_mode<synchronous>, transform_indices = @transform_4, window_bounds = array<i64: 1, 128>}, {pipeline_mode = #tpu.pipeline_mode<synchronous>, transform_indices = @transform_5, window_bounds = array<i64: 1, 128>}, {pipeline_mode = #tpu.pipeline_mode<synchronous>, transform_indices = @transform_6, window_bounds = array<i64: 1, 128>}, {transform_indices = @transform_7, window_bounds = array<i64: 16, 128>}]} {
    %c0 = arith.constant 0 : index
    %c0_0 = arith.constant 0 : index
    %0 = vector.load %arg1[%c0, %c0_0] : memref<16x128xf32, #tpu.memory_space<vmem>>, vector<16x128xf32>
    %c0_1 = arith.constant 0 : index
    %c0_2 = arith.constant 0 : index
    %1 = vector.load %arg2[%c0_1, %c0_2] : memref<128x128xf32, #tpu.memory_space<vmem>>, vector<128x128xf32>
    %cst = arith.constant dense<0.000000e+00> : vector<16x128xf32>
    %2 = tpu.matmul %0, %1, %cst {dimension_numbers = #tpu.dot_dimension_numbers<[1], [0], [0], [1], [0, 0, 1, 1], [], []>} : vector<16x128xf32>, vector<128x128xf32>, vector<16x128xf32> -> vector<16x128xf32>
    %c0_3 = arith.constant 0 : index
    %c0_4 = arith.constant 0 : index
    %3 = vector.load %arg3[%c0_3, %c0_4] : memref<1x128xf32, #tpu.memory_space<vmem>>, vector<1x128xf32>
    %4 = vector.broadcast %3 : vector<1x128xf32> to vector<16x128xf32>
    %5 = arith.addf %2, %4 : vector<16x128xf32>
    %cst_5 = arith.constant 0.000000e+00 : f32
    %6 = vector.broadcast %cst_5 : f32 to vector<16x128xf32>
    %7 = arith.maximumf %5, %6 : vector<16x128xf32>
    %c0_6 = arith.constant 0 : index
    %c0_7 = arith.constant 0 : index
    %8 = vector.load %arg4[%c0_6, %c0_7] : memref<128x128xf32, #tpu.memory_space<vmem>>, vector<128x128xf32>
    %cst_8 = arith.constant dense<0.000000e+00> : vector<16x128xf32>
    %9 = tpu.matmul %7, %8, %cst_8 {dimension_numbers = #tpu.dot_dimension_numbers<[1], [0], [0], [1], [0, 0, 1, 1], [], []>} : vector<16x128xf32>, vector<128x128xf32>, vector<16x128xf32> -> vector<16x128xf32>
    %c0_9 = arith.constant 0 : index
    %c0_10 = arith.constant 0 : index
    %10 = vector.load %arg5[%c0_9, %c0_10] : memref<1x128xf32, #tpu.memory_space<vmem>>, vector<1x128xf32>
    %11 = vector.broadcast %10 : vector<1x128xf32> to vector<16x128xf32>
    %12 = arith.addf %9, %11 : vector<16x128xf32>
    %13 = arith.addf %12, %0 : vector<16x128xf32>
    %cst_11 = arith.constant dense<0.000000e+00> : vector<16xf32>
    %14 = vector.multi_reduction <add>, %13, %cst_11 [1] : vector<16x128xf32> to vector<16xf32>
    %15 = vector.shape_cast %14 : vector<16xf32> to vector<16x1xf32>
    %cst_12 = arith.constant 3.125000e-02 : f32
    %16 = vector.broadcast %cst_12 : f32 to vector<16x1xf32>
    %17 = arith.mulf %15, %16 : vector<16x1xf32>
    %18 = arith.mulf %13, %13 : vector<16x128xf32>
    %cst_13 = arith.constant dense<0.000000e+00> : vector<16xf32>
    %19 = vector.multi_reduction <add>, %18, %cst_13 [1] : vector<16x128xf32> to vector<16xf32>
    %20 = vector.shape_cast %19 : vector<16xf32> to vector<16x1xf32>
    %cst_14 = arith.constant 3.125000e-02 : f32
    %21 = vector.broadcast %cst_14 : f32 to vector<16x1xf32>
    %22 = arith.mulf %20, %21 : vector<16x1xf32>
    %23 = arith.mulf %17, %17 : vector<16x1xf32>
    %24 = arith.subf %22, %23 : vector<16x1xf32>
    %cst_15 = arith.constant 0.000000e+00 : f32
    %25 = vector.broadcast %cst_15 : f32 to vector<16x1xf32>
    %26 = arith.maximumf %24, %25 : vector<16x1xf32>
    %27 = vector.broadcast %17 : vector<16x1xf32> to vector<16x128xf32>
    %28 = arith.subf %13, %27 : vector<16x128xf32>
    %cst_16 = arith.constant 9.99999974E-6 : f32
    %29 = vector.broadcast %cst_16 : f32 to vector<16x1xf32>
    %30 = arith.addf %26, %29 : vector<16x1xf32>
    %31 = math.rsqrt %30 : vector<16x1xf32>
    %32 = vector.broadcast %31 : vector<16x1xf32> to vector<16x128xf32>
    %33 = arith.mulf %28, %32 : vector<16x128xf32>
    %c0_17 = arith.constant 0 : index
    %c0_18 = arith.constant 0 : index
    %34 = vector.load %arg6[%c0_17, %c0_18] : memref<1x128xf32, #tpu.memory_space<vmem>>, vector<1x128xf32>
    %35 = vector.broadcast %34 : vector<1x128xf32> to vector<16x128xf32>
    %36 = arith.mulf %33, %35 : vector<16x128xf32>
    %c0_19 = arith.constant 0 : index
    %c0_20 = arith.constant 0 : index
    %37 = vector.load %arg7[%c0_19, %c0_20] : memref<1x128xf32, #tpu.memory_space<vmem>>, vector<1x128xf32>
    %38 = vector.broadcast %37 : vector<1x128xf32> to vector<16x128xf32>
    %39 = arith.addf %36, %38 : vector<16x128xf32>
    %c0_21 = arith.constant 0 : index
    %c0_22 = arith.constant 0 : index
    %40 = vector.load %arg8[%c0_21, %c0_22] : memref<16x128xf32, #tpu.memory_space<vmem>>, vector<16x128xf32>
    tpu.vector_store %arg8[%c0_21, %c0_22], %39 {strides = array<i32>} : memref<16x128xf32, #tpu.memory_space<vmem>>, vector<16x128xf32>,
    return
  }
  func.func @transform_0(%arg0: i32) -> (i32, i32) {
    %c0_i32 = arith.constant 0 : i32
    %c0_i32_0 = arith.constant 0 : i32
    return %arg0, %c0_i32 : i32, i32
  }
  func.func @transform_1(%arg0: i32) -> (i32, i32) {
    %c0_i32 = arith.constant 0 : i32
    %c0_i32_0 = arith.constant 0 : i32
    %c0_i32_1 = arith.constant 0 : i32
    return %c0_i32, %c0_i32_0 : i32, i32
  }
  func.func @transform_2(%arg0: i32) -> (i32, i32) {
    %c0_i32 = arith.constant 0 : i32
    %c0_i32_0 = arith.constant 0 : i32
    %c0_i32_1 = arith.constant 0 : i32
    return %c0_i32, %c0_i32_0 : i32, i32
  }
  func.func @transform_3(%arg0: i32) -> (i32, i32) {
    %c0_i32 = arith.constant 0 : i32
    %c0_i32_0 = arith.constant 0 : i32
    %c0_i32_1 = arith.constant 0 : i32
    return %c0_i32, %c0_i32_0 : i32, i32
  }
  func.func @transform_4(%arg0: i32) -> (i32, i32) {
    %c0_i32 = arith.constant 0 : i32
    %c0_i32_0 = arith.constant 0 : i32
    %c0_i32_1 = arith.constant 0 : i32
    return %c0_i32, %c0_i32_0 : i32, i32
  }
  func.func @transform_5(%arg0: i32) -> (i32, i32) {
    %c0_i32 = arith.constant 0 : i32
    %c0_i32_0 = arith.constant 0 : i32
    %c0_i32_1 = arith.constant 0 : i32
    return %c0_i32, %c0_i32_0 : i32, i32
  }
  func.func @transform_6(%arg0: i32) -> (i32, i32) {
    %c0_i32 = arith.constant 0 : i32
    %c0_i32_0 = arith.constant 0 : i32
    %c0_i32_1 = arith.constant 0 : i32
    return %c0_i32, %c0_i32_0 : i32, i32
  }
  func.func @transform_7(%arg0: i32) -> (i32, i32) {
    %c0_i32 = arith.constant 0 : i32
    %c0_i32_0 = arith.constant 0 : i32
    return %arg0, %c0_i32 : i32, i32
  }
}

</mosaic_0001>

<llo_original>
// kernel: tpu_custom_call.1
$region0: #{tpu_custom_call.1}
  #allocation0 [shape = 'u32[]', space=smem, size = 0x4, offset = 0x4, fixed_abs, tag = 'smem constant byte address 0x4 - core index']
  #allocation1 [shape = 'u32[144,128]{1,0:T(1,128)}', space=vmem, size = 0x12000, scoped, tag = 'internal scratch']
  %s0 = inlined_call_operand.hbm [shape: f32[16,128], index: 0, kind: input, shape index: {}]
  %s1 = inlined_call_operand.hbm [shape: f32[128,128], index: 1, kind: input, shape index: {}]
  %s2 = inlined_call_operand.vmem [shape: f32[1,128], index: 2, kind: input, shape index: {}]
  %s3 = inlined_call_operand.hbm [shape: f32[128,128], index: 3, kind: input, shape index: {}]
  %s4 = inlined_call_operand.vmem [shape: f32[1,128], index: 4, kind: input, shape index: {}]
  %s5 = inlined_call_operand.vmem [shape: f32[1,128], index: 5, kind: input, shape index: {}]
  %s6 = inlined_call_operand.vmem [shape: f32[1,128], index: 6, kind: input, shape index: {}]
  %s7 = inlined_call_operand.hbm [shape: f32[16,128], index: 7, kind: output, shape index: {}]
  %s8 = sld [smem:[#allocation0]]
  $region50: #{tpu_custom_call.1} parent=0
    _
  %s10 = ssub.s32 1, %s8
  %s11 = scalar_select 0, %s10, %s8
  $region1: #{tpu_custom_call.1} parent=0
    #allocation2 [shape = 'u8[8192]{0}', space=vmem, size = 0x2000, scoped, tag = 'input window, operand 0, single buffered']
    #allocation3 [shape = 's32[1]{0}', space=sflag, size = 0x4, scoped, tag = 'scoped memory for tpu_custom_call.1']
    #allocation4 [shape = 's32[1]{0}', space=sflag, size = 0x4, scoped, tag = 'scoped memory for tpu_custom_call.1']
    #allocation5 [shape = 'u8[65536]{0}', space=vmem, size = 0x10000, scoped, tag = 'input window, operand 1, single buffered']
    #allocation6 [shape = 's32[1]{0}', space=sflag, size = 0x4, scoped, tag = 'scoped memory for tpu_custom_call.1']
    #allocation7 [shape = 'u8[65536]{0}', space=vmem, size = 0x10000, scoped, tag = 'input window, operand 3, single buffered']
    #allocation8 [shape = 'u8[8192]{0}', space=vmem, size = 0x2000, scoped, tag = 'output window, operand 0, single buffered']
    %12 = vsyncpa [#allocation3], 0
    %13 = vsyncpa [#allocation6], 0
    %14 = vsyncpa [#allocation4], 0
    // Predicated region
    $region2: #{tpu_custom_call.1} parent=1 // pred_check
      _
    $region3: #{tpu_custom_call.1} parent=1 // pred_check_branch
      %16 = sbr.rel (0) target = $region5
    $region4: #{tpu_custom_call.1} parent=1 // pred_region
      %s18 = ssub.s32 256, 256
      %19 = vsyncadd [#allocation3], %s18
      %s20 = sshll.u32 [#allocation2], 4
      %s21 = int_to_ptr.vmem [resolvable:$true] %s20
      %26 = dma.hbm_to_vmem [thread:$0]  %s0, 256, %s21, [#allocation3], 128, 128, 8
    $region5: #{tpu_custom_call.1} parent=1 // pred_fallthru
      _
    // Predicated region
    $region6: #{tpu_custom_call.1} parent=1 // pred_check
      _
    $region7: #{tpu_custom_call.1} parent=1 // pred_check_branch
      %28 = sbr.rel (0) target = $region9
    $region8: #{tpu_custom_call.1} parent=1 // pred_region
      %s30 = ssub.s32 2048, 2048
      %31 = vsyncadd [#allocation6], %s30
      %s32 = sshll.u32 [#allocation5], 4
      %s33 = int_to_ptr.vmem [resolvable:$true] %s32
      %38 = dma.hbm_to_vmem [thread:$0]  %s1, 2048, %s33, [#allocation6], 128, 128, 8
    $region9: #{tpu_custom_call.1} parent=1 // pred_fallthru
      _
    // Predicated region
    $region10: #{tpu_custom_call.1} parent=1 // pred_check
      _
    $region11: #{tpu_custom_call.1} parent=1 // pred_check_branch
      %40 = sbr.rel (0) target = $region13
    $region12: #{tpu_custom_call.1} parent=1 // pred_region
      _
    $region13: #{tpu_custom_call.1} parent=1 // pred_fallthru
      _
    // Predicated region
    $region14: #{tpu_custom_call.1} parent=1 // pred_check
      _
    $region15: #{tpu_custom_call.1} parent=1 // pred_check_branch
      %42 = sbr.rel (0) target = $region17
    $region16: #{tpu_custom_call.1} parent=1 // pred_region
      %s44 = ssub.s32 2048, 2048
      %45 = vsyncadd [#allocation6], %s44
      %s46 = sshll.u32 [#allocation7], 4
      %s47 = int_to_ptr.vmem [resolvable:$true] %s46
      %52 = dma.hbm_to_vmem [thread:$0]  %s3, 2048, %s47, [#allocation6], 128, 128, 8
    $region17: #{tpu_custom_call.1} parent=1 // pred_fallthru
      _
    // Predicated region
    $region18: #{tpu_custom_call.1} parent=1 // pred_check
      _
    $region19: #{tpu_custom_call.1} parent=1 // pred_check_branch
      %54 = sbr.rel (0) target = $region21
    $region20: #{tpu_custom_call.1} parent=1 // pred_region
      _
    $region21: #{tpu_custom_call.1} parent=1 // pred_fallthru
      _
    // Predicated region
    $region22: #{tpu_custom_call.1} parent=1 // pred_check
      _
    $region23: #{tpu_custom_call.1} parent=1 // pred_check_branch
      %56 = sbr.rel (0) target = $region25
    $region24: #{tpu_custom_call.1} parent=1 // pred_region
      _
    $region25: #{tpu_custom_call.1} parent=1 // pred_fallthru
      _
    // Predicated region
    $region26: #{tpu_custom_call.1} parent=1 // pred_check
      _
    $region27: #{tpu_custom_call.1} parent=1 // pred_check_branch
      %58 = sbr.rel (0) target = $region29
    $region28: #{tpu_custom_call.1} parent=1 // pred_region
      _
    $region29: #{tpu_custom_call.1} parent=1 // pred_fallthru
      _
    // Predicated region
    $region30: #{tpu_custom_call.1} parent=1 // pred_check
      _
    $region31: #{tpu_custom_call.1} parent=1 // pred_check_branch
      %60 = sbr.rel (0) target = $region33
    $region32: #{tpu_custom_call.1} parent=1 // pred_region
      %61 = dma.done [#allocation3], 256
    $region33: #{tpu_custom_call.1} parent=1 // pred_fallthru
      _
    // Predicated region
    $region34: #{tpu_custom_call.1} parent=1 // pred_check
      _
    $region35: #{tpu_custom_call.1} parent=1 // pred_check_branch
      %63 = sbr.rel (0) target = $region37
    $region36: #{tpu_custom_call.1} parent=1 // pred_region
      %64 = dma.done [#allocation6], 2048
    $region37: #{tpu_custom_call.1} parent=1 // pred_fallthru
      _
    // Predicated region
    $region38: #{tpu_custom_call.1} parent=1 // pred_check
      _
    $region39: #{tpu_custom_call.1} parent=1 // pred_check_branch
      %66 = sbr.rel (0) target = $region41
    $region40: #{tpu_custom_call.1} parent=1 // pred_region
      %67 = dma.done [#allocation6], 2048
    $region41: #{tpu_custom_call.1} parent=1 // pred_fallthru
      _
    %v68 = vld [vmem:[#allocation2] sm:$0xff]
    %v69 = vld [vmem:[#allocation2 + $0x8] sm:$0xff]
    %v70 = vld [vmem:[#allocation5] sm:$0xff]
    %v71 = vld [vmem:[#allocation5 + $0x8] sm:$0xff]
    %v72 = vld [vmem:[#allocation5 + $0x10] sm:$0xff]
    %v73 = vld [vmem:[#allocation5 + $0x18] sm:$0xff]
    %v74 = vld [vmem:[#allocation5 + $0x20] sm:$0xff]
    %v75 = vld [vmem:[#allocation5 + $0x28] sm:$0xff]
    %v76 = vld [vmem:[#allocation5 + $0x30] sm:$0xff]
    %v77 = vld [vmem:[#allocation5 + $0x38] sm:$0xff]
    %v78 = vld [vmem:[#allocation5 + $0x40] sm:$0xff]
    %v79 = vld [vmem:[#allocation5 + $0x48] sm:$0xff]
    %v80 = vld [vmem:[#allocation5 + $0x50] sm:$0xff]
    %v81 = vld [vmem:[#allocation5 + $0x58] sm:$0xff]
    %v82 = vld [vmem:[#allocation5 + $0x60] sm:$0xff]
    %v83 = vld [vmem:[#allocation5 + $0x68] sm:$0xff]
    %v84 = vld [vmem:[#allocation5 + $0x70] sm:$0xff]
    %v85 = vld [vmem:[#allocation5 + $0x78] sm:$0xff]
    %v86 = vld [vmem:[%s2] sm:$0x1]
    %v88 = vlaneseq
    %v89 = vshrl.u32 %v88, 7
    %v90 = vsub.s32 0, %v89
    %v91 = vrot.slane %v86, %v90
    %93 = vmatprep.subr.mxu0 0.0
    %94 = vmatpush1.msra.mxu0 %v70
    %95 = vmatprep.subr.mxu0 0.0
    %96 = vmatpush1.msra.mxu0 %v71
    %97 = vmatprep.subr.mxu0 0.0
    %98 = vmatpush1.msra.mxu0 %v72
    %99 = vmatprep.subr.mxu0 0.0
    %100 = vmatpush1.msra.mxu0 %v73
    %101 = vmatprep.subr.mxu0 0.0
    %102 = vmatpush1.msra.mxu0 %v74
    %103 = vmatprep.subr.mxu0 0.0
    %104 = vmatpush1.msra.mxu0 %v75
    %105 = vmatprep.subr.mxu0 0.0
    %106 = vmatpush1.msra.mxu0 %v76
    %107 = vmatprep.subr.mxu0 0.0
    %108 = vmatpush1.msra.mxu0 %v77
    %109 = vmatprep.subr.mxu0 0.0
    %110 = vmatpush1.msra.mxu0 %v78
    %111 = vmatprep.subr.mxu0 0.0
    %112 = vmatpush1.msra.mxu0 %v79
    %113 = vmatprep.subr.mxu0 0.0
    %114 = vmatpush1.msra.mxu0 %v80
    %115 = vmatprep.subr.mxu0 0.0
    %116 = vmatpush1.msra.mxu0 %v81
    %117 = vmatprep.subr.mxu0 0.0
    %118 = vmatpush1.msra.mxu0 %v82
    %119 = vmatprep.subr.mxu0 0.0
    %120 = vmatpush1.msra.mxu0 %v83
    %121 = vmatprep.subr.mxu0 0.0
    %122 = vmatpush1.msra.mxu0 %v84
    %123 = vmatprep.subr.mxu0 0.0
    %124 = vmatpush1.msra.mxu0 %v85
    %125 = vmatprep.subr.mxu0 0.0
    %126 = vmatpush1.msra.mxu0 0.0
    %127 = vmatprep.subr.mxu0 0.0
    %128 = vmatpush1.msra.mxu0 0.0
    %129 = vmatprep.subr.mxu0 0.0
    %130 = vmatpush1.msra.mxu0 0.0
    %131 = vmatprep.subr.mxu0 0.0
    %132 = vmatpush1.msra.mxu0 0.0
    %133 = vmatprep.subr.mxu0 0.0
    %134 = vmatpush1.msra.mxu0 0.0
    %135 = vmatprep.subr.mxu0 0.0
    %136 = vmatpush1.msra.mxu0 0.0
    %137 = vmatprep.subr.mxu0 0.0
    %138 = vmatpush1.msra.mxu0 0.0
    %139 = vmatprep.subr.mxu0 0.0
    %140 = vmatpush1.msra.mxu0 0.0
    %141 = vmatprep.subr.mxu0 0.0
    %142 = vmatpush1.msra.mxu0 0.0
    %143 = vmatprep.subr.mxu0 0.0
    %144 = vmatpush1.msra.mxu0 0.0
    %145 = vmatprep.subr.mxu0 0.0
    %146 = vmatpush1.msra.mxu0 0.0
    %147 = vmatprep.subr.mxu0 0.0
    %148 = vmatpush1.msra.mxu0 0.0
    %149 = vmatprep.subr.mxu0 0.0
    %150 = vmatpush1.msra.mxu0 0.0
    %151 = vmatprep.subr.mxu0 0.0
    %152 = vmatpush1.msra.mxu0 0.0
    %153 = vmatprep.subr.mxu0 0.0
    %154 = vmatpush1.msra.mxu0 0.0
    %155 = vmatprep.subr.mxu0 0.0
    %156 = vmatpush1.msra.mxu0 0.0
    %157 = vmatprep.mubr.f32.mxu0 0.0
    %158 = vmatmul.mubr.f32.gmra.mrb[0].mxu0 %v68
    %v159 = vpop.f32.mrb[0].mxu0
    %v160 = vadd.f32 %v91, %v159
    %v161 = vpop.f32.mrb[0].mxu0
    %162 = vmatprep.mubr.f32.mxu0 0.0
    %163 = vmatmul.mubr.f32.gmra.mrb[0].mxu0 %v69
    %v164 = vpop.f32.mrb[0].mxu0
    %v165 = vadd.f32 %v91, %v164
    %v166 = vpop.f32.mrb[0].mxu0
    %167 = vdwg.mxu0
    %v168 = vmax.f32 %v160, 0.0
    %v169 = vmax.f32 %v165, 0.0
    %v170 = vld [vmem:[#allocation7] sm:$0xff]
    %v171 = vld [vmem:[#allocation7 + $0x8] sm:$0xff]
    %v172 = vld [vmem:[#allocation7 + $0x10] sm:$0xff]
    %v173 = vld [vmem:[#allocation7 + $0x18] sm:$0xff]
    %v174 = vld [vmem:[#allocation7 + $0x20] sm:$0xff]
    %v175 = vld [vmem:[#allocation7 + $0x28] sm:$0xff]
    %v176 = vld [vmem:[#allocation7 + $0x30] sm:$0xff]
    %v177 = vld [vmem:[#allocation7 + $0x38] sm:$0xff]
    %v178 = vld [vmem:[#allocation7 + $0x40] sm:$0xff]
    %v179 = vld [vmem:[#allocation7 + $0x48] sm:$0xff]
    %v180 = vld [vmem:[#allocation7 + $0x50] sm:$0xff]
    %v181 = vld [vmem:[#allocation7 + $0x58] sm:$0xff]
    %v182 = vld [vmem:[#allocation7 + $0x60] sm:$0xff]
    %v183 = vld [vmem:[#allocation7 + $0x68] sm:$0xff]
    %v184 = vld [vmem:[#allocation7 + $0x70] sm:$0xff]
    %v185 = vld [vmem:[#allocation7 + $0x78] sm:$0xff]
    %v186 = vld [vmem:[%s4] sm:$0x1]
    %v188 = vlaneseq
    %v189 = vshrl.u32 %v188, 7
    %v190 = vsub.s32 0, %v189
    %v191 = vrot.slane %v186, %v190
    %193 = vmatprep.subr.mxu0 0.0
    %194 = vmatpush1.msra.mxu0 %v170
    %195 = vmatprep.subr.mxu0 0.0
    %196 = vmatpush1.msra.mxu0 %v171
    %197 = vmatprep.subr.mxu0 0.0
    %198 = vmatpush1.msra.mxu0 %v172
    %199 = vmatprep.subr.mxu0 0.0
    %200 = vmatpush1.msra.mxu0 %v173
    %201 = vmatprep.subr.mxu0 0.0
    %202 = vmatpush1.msra.mxu0 %v174
    %203 = vmatprep.subr.mxu0 0.0
    %204 = vmatpush1.msra.mxu0 %v175
    %205 = vmatprep.subr.mxu0 0.0
    %206 = vmatpush1.msra.mxu0 %v176
    %207 = vmatprep.subr.mxu0 0.0
    %208 = vmatpush1.msra.mxu0 %v177
    %209 = vmatprep.subr.mxu0 0.0
    %210 = vmatpush1.msra.mxu0 %v178
    %211 = vmatprep.subr.mxu0 0.0
    %212 = vmatpush1.msra.mxu0 %v179
    %213 = vmatprep.subr.mxu0 0.0
    %214 = vmatpush1.msra.mxu0 %v180
    %215 = vmatprep.subr.mxu0 0.0
    %216 = vmatpush1.msra.mxu0 %v181
    %217 = vmatprep.subr.mxu0 0.0
    %218 = vmatpush1.msra.mxu0 %v182
    %219 = vmatprep.subr.mxu0 0.0
    %220 = vmatpush1.msra.mxu0 %v183
    %221 = vmatprep.subr.mxu0 0.0
    %222 = vmatpush1.msra.mxu0 %v184
    %223 = vmatprep.subr.mxu0 0.0
    %224 = vmatpush1.msra.mxu0 %v185
    %225 = vmatprep.subr.mxu0 0.0
    %226 = vmatpush1.msra.mxu0 0.0
    %227 = vmatprep.subr.mxu0 0.0
    %228 = vmatpush1.msra.mxu0 0.0
    %229 = vmatprep.subr.mxu0 0.0
    %230 = vmatpush1.msra.mxu0 0.0
    %231 = vmatprep.subr.mxu0 0.0
    %232 = vmatpush1.msra.mxu0 0.0
    %233 = vmatprep.subr.mxu0 0.0
    %234 = vmatpush1.msra.mxu0 0.0
    %235 = vmatprep.subr.mxu0 0.0
    %236 = vmatpush1.msra.mxu0 0.0
    %237 = vmatprep.subr.mxu0 0.0
    %238 = vmatpush1.msra.mxu0 0.0
    %239 = vmatprep.subr.mxu0 0.0
    %240 = vmatpush1.msra.mxu0 0.0
    %241 = vmatprep.subr.mxu0 0.0
    %242 = vmatpush1.msra.mxu0 0.0
    %243 = vmatprep.subr.mxu0 0.0
    %244 = vmatpush1.msra.mxu0 0.0
    %245 = vmatprep.subr.mxu0 0.0
    %246 = vmatpush1.msra.mxu0 0.0
    %247 = vmatprep.subr.mxu0 0.0
    %248 = vmatpush1.msra.mxu0 0.0
    %249 = vmatprep.subr.mxu0 0.0
    %250 = vmatpush1.msra.mxu0 0.0
    %251 = vmatprep.subr.mxu0 0.0
    %252 = vmatpush1.msra.mxu0 0.0
    %253 = vmatprep.subr.mxu0 0.0
    %254 = vmatpush1.msra.mxu0 0.0
    %255 = vmatprep.subr.mxu0 0.0
    %256 = vmatpush1.msra.mxu0 0.0
    %257 = vmatprep.mubr.f32.mxu0 0.0
    %258 = vmatmul.mubr.f32.gmra.mrb[0].mxu0 %v168
    %v259 = vpop.f32.mrb[0].mxu0
    %v260 = vadd.f32 %v191, %v259
    %v261 = vpop.f32.mrb[0].mxu0
    %262 = vmatprep.mubr.f32.mxu0 0.0
    %263 = vmatmul.mubr.f32.gmra.mrb[0].mxu0 %v169
    %v264 = vpop.f32.mrb[0].mxu0
    %v265 = vadd.f32 %v191, %v264
    %v266 = vpop.f32.mrb[0].mxu0
    %267 = vdwg.mxu0
    %v268 = vadd.f32 %v260, %v68
    %v269 = vadd.f32 %v265, %v69
    %270 = vadd.xlane.f32.xlu0 %v268
    %v271 = vpop.xlane.xlu0 %270
    %272 = vadd.xlane.f32.xlu0 %v269
    %v273 = vpop.xlane.xlu0 %272
    %v274 = vmul.f32 %v271, 0.03125
    %v275 = vmul.f32 %v273, 0.03125
    %v276 = vmul.f32 %v268, %v268
    %v277 = vmul.f32 %v269, %v269
    %278 = vadd.xlane.f32.xlu0 %v276
    %v279 = vpop.xlane.xlu0 %278
    %280 = vadd.xlane.f32.xlu0 %v277
    %v281 = vpop.xlane.xlu0 %280
    %v282 = vmul.f32 %v279, 0.03125
    %v283 = vmul.f32 %v281, 0.03125
    %v284 = vmul.f32 %v274, %v274
    %v285 = vmul.f32 %v275, %v275
    %v286 = vsub.f32 %v282, %v284
    %v287 = vsub.f32 %v283, %v285
    %v288 = vmax.f32 %v286, 0.0
    %v289 = vmax.f32 %v287, 0.0
    %v290 = vsub.f32 %v268, %v274
    %v291 = vsub.f32 %v269, %v275
    %v292 = vadd.f32 %v288, 1e-05
    %v293 = vadd.f32 %v289, 1e-05
    %v294 = vrsqrt.pop %v292
    %v295 = vrsqrt.pop %v293
    %v296 = vmul.f32 %v290, %v294
    %v297 = vmul.f32 %v291, %v295
    %v298 = vld [vmem:[%s5] sm:$0x1]
    %v300 = vlaneseq
    %v301 = vshrl.u32 %v300, 7
    %v302 = vsub.s32 0, %v301
    %v303 = vrot.slane %v298, %v302
    %v305 = vmul.f32 %v296, %v303
    %v306 = vmul.f32 %v297, %v303
    %v307 = vld [vmem:[%s6] sm:$0x1]
    %v309 = vlaneseq
    %v310 = vshrl.u32 %v309, 7
    %v311 = vsub.s32 0, %v310
    %v312 = vrot.slane %v307, %v311
    %v314 = vadd.f32 %v305, %v312
    %v315 = vadd.f32 %v306, %v312
    %316 = vst [vmem:[#allocation8] sm:$0xff] %v314
    %317 = vst [vmem:[#allocation8 + $0x8] sm:$0xff] %v315
    // Predicated region
    $region42: #{tpu_custom_call.1} parent=1 // pred_check
      _
    $region43: #{tpu_custom_call.1} parent=1 // pred_check_branch
      %319 = sbr.rel (0) target = $region45
    $region44: #{tpu_custom_call.1} parent=1 // pred_region
      %s321 = ssub.s32 256, 256
      %322 = vsyncadd [#allocation4], %s321
      %s323 = sshll.u32 [#allocation8], 4
      %s324 = int_to_ptr.vmem [resolvable:$true] %s323
      %329 = dma.vmem_to_hbm [thread:$0]  %s324, 256, %s7, [#allocation4], 128, 128, 8
    $region45: #{tpu_custom_call.1} parent=1 // pred_fallthru
      _
    // Predicated region
    $region46: #{tpu_custom_call.1} parent=1 // pred_check
      _
    $region47: #{tpu_custom_call.1} parent=1 // pred_check_branch
      %331 = sbr.rel (0) target = $region49
    $region48: #{tpu_custom_call.1} parent=1 // pred_region
      %332 = dma.done [#allocation4], 256
    $region49: #{tpu_custom_call.1} parent=1 // pred_fallthru
      _
    %333 = vsyncpa [#allocation3], 1
    %334 = vsyncpa [#allocation6], 1
    %335 = vsyncpa [#allocation4], 1

</llo_original>
